<compile_context>
chip_gen: v6e
topology: v6e:2x2x1
jax: 0.10.0
libtpu: 0.0.40
codegen_flags: <defaults>
</compile_context>

<pallas_src>
import functools

import jax
import jax.numpy as jnp
from jax import lax
from jax.experimental import pallas as pl
from jax.experimental.pallas import tpu as pltpu


def _softplus(x):
    # numerically-stable softplus: max(x, 0) + log1p(exp(-|x|))
    return jnp.maximum(x, 0.0) + jnp.log1p(jnp.exp(-jnp.abs(x)))


def _round_up(n, m):
    return ((n + m - 1) // m) * m


def actor_critic_kernel(
    x_ref,        # (TILE_B, num_inputs)            f32 (cast to bf16 in-kernel)
    w1_ref,       # (num_inputs, 2*hidden)          dot dtype (bf16)
    b1_ref,       # (1, 2*hidden)                   f32
    w2_ref,       # (2*hidden, width_p)             dot dtype (bf16)
    b2_ref,       # (1, width_p)                    f32
    out_ref,      # (TILE_B, width_p)               f32  [mean | std | value | 0]
    *,
    num_outputs,
):
    # ---- cast x on the VPU (hidden under DMA), then fused first layer ----
    x = x_ref[...].astype(w1_ref.dtype)
    h = jnp.dot(x, w1_ref[...], preferred_element_type=jnp.float32)
    h = jnp.maximum(h + b1_ref[...], 0.0)

    # ---- fused second layer: [mu | var | value | 0-pad] in one MXU pass ----
    z = jnp.dot(h.astype(w2_ref.dtype), w2_ref[...],
                preferred_element_type=jnp.float32)
    z = z + b2_ref[...]

    # ---- epilogue (f32, pure VPU/EUP, whole-slab, per-column select) ----
    mean = jnp.clip(z, -1.0, 1.0)                       # valid on mu columns
    std = jnp.sqrt(_softplus(z) + 1e-5)                 # valid on var columns
    col = lax.broadcasted_iota(jnp.int32, z.shape, 1)
    packed = jnp.where(col < num_outputs, mean,
                       jnp.where(col < 2 * num_outputs, std, z))
    out_ref[...] = packed                               # unmasked, lane-dense


def pack_params(p, dot_dtype=jnp.bfloat16):
    """Fuse the five Linear layers into two weight blobs + two bias rows.

    The second-layer block matrix is zero-padded to a multiple of 128 output
    columns so the kernel's output store is full-lane (no masked vst).
    """
    hidden = p["w1c"].shape[1]
    no = p["wmu"].shape[1]
    width = 2 * no + 1
    width_p = max(128, _round_up(width, 128))

    # first layer: [critic1 | actor_hidden1]
    w1 = jnp.concatenate([p["w1c"], p["wa"]], axis=1)          # (in, 2H)
    b1 = jnp.concatenate([p["b1c"], p["ba"]], axis=1)          # (1, 2H)

    # second layer: block matrix producing [mu | var | value | 0-pad]
    w2 = jnp.zeros((2 * hidden, width_p), jnp.float32)
    w2 = w2.at[hidden:, :no].set(p["wmu"])
    w2 = w2.at[hidden:, no:2 * no].set(p["wvar"])
    w2 = w2.at[:hidden, 2 * no:2 * no + 1].set(p["w2c"])
    b2 = jnp.zeros((1, width_p), jnp.float32)
    b2 = b2.at[:, :no].set(p["bmu"])
    b2 = b2.at[:, no:2 * no].set(p["bvar"])
    b2 = b2.at[:, 2 * no:2 * no + 1].set(p["b2c"])

    return (w1.astype(dot_dtype), b1.astype(jnp.float32),
            w2.astype(dot_dtype), b2.astype(jnp.float32), width_p)


def _vmem_budget_bytes():
    """Generation-aware VMEM cap: ~48 MiB on v7x (64 MiB phys), 64 MiB on v5e/v6e."""
    phys = 64 * 1024 * 1024
    try:
        phys = getattr(pltpu.get_tpu_info(), "vmem_capacity_bytes", phys)
    except Exception:
        pass
    return int(min(64 * 1024 * 1024, phys * 3 // 4))


def _choose_tile(B, tile_b, num_inputs, hidden, width_p, vmem_budget):
    """Pick a batch tile: multiple of 16 rows, fits VMEM, >=2 tiles if possible."""
    # Resident weights/biases (bf16 weights, f32 biases), single-buffered.
    weight_bytes = (num_inputs * 2 * hidden + 2 * hidden * width_p) * 2 \
                   + (2 * hidden + width_p) * 4
    # Per-batch-row VMEM cost: triple-buffered f32 x, double-buffered f32 out,
    # h (f32 + bf16 copy), and epilogue temporaries on the 128-wide slab.
    per_row = (num_inputs * 4 * 3
               + width_p * 4 * 2
               + 2 * hidden * (4 + 2)
               + width_p * 4 * 3)
    headroom = 4 * 1024 * 1024
    avail = max(vmem_budget - weight_bytes - headroom, per_row * 16)
    cap = max(16, (avail // per_row) // 16 * 16)
    tile_b = max(16, min(tile_b, cap))

    # >= 2 grid tiles when the batch allows it (v7x megacore), 16-row aligned.
    target_tiles = max(2, pl.cdiv(B, tile_b))
    tb = _round_up(pl.cdiv(B, target_tiles), 16)
    tb = max(16, min(tb, _round_up(tile_b, 16)))
    num_tiles = pl.cdiv(B, tb)
    return tb, num_tiles


def actor_critic_forward(x, params, *, tile_b=1024, dot_dtype=jnp.bfloat16):
    """x: [B, num_inputs] float32. Returns (mean, std, value)."""
    B, num_inputs = x.shape
    hidden = params["w1c"].shape[1]
    no = params["wmu"].shape[1]

    w1, b1, w2, b2, width_p = pack_params(params, dot_dtype)
    vmem_budget = _vmem_budget_bytes()
    tb, num_tiles = _choose_tile(B, tile_b, num_inputs, hidden, width_p,
                                 vmem_budget)

    b_pad = num_tiles * tb
    x_in = x.astype(jnp.float32)          # f32 into the kernel; cast in-kernel
    if b_pad != B:
        x_in = jnp.pad(x_in, ((0, b_pad - B), (0, 0)))

    def build_specs(use_pipeline_mode):
        def spec(shape, imap, bufs=None):
            if use_pipeline_mode and bufs is not None:
                return pl.BlockSpec(shape, imap, pipeline_mode=pl.Buffered(bufs))
            return pl.BlockSpec(shape, imap)

        in_specs = [
            spec((tb, num_inputs), lambda i: (i, 0), bufs=3),           # x (streamed)
            spec((num_inputs, 2 * hidden), lambda i: (0, 0), bufs=1),   # W1 (resident)
            spec((1, 2 * hidden), lambda i: (0, 0), bufs=1),            # b1 (resident)
            spec((2 * hidden, width_p), lambda i: (0, 0), bufs=1),      # W2 (resident)
            spec((1, width_p), lambda i: (0, 0), bufs=1),               # b2 (resident)
        ]
        out_spec = pl.BlockSpec((tb, width_p), lambda i: (i, 0))
        return in_specs, out_spec

    def run(use_pipeline_mode):
        in_specs, out_spec = build_specs(use_pipeline_mode)
        return pl.pallas_call(
            functools.partial(actor_critic_kernel, num_outputs=no),
            out_shape=jax.ShapeDtypeStruct((b_pad, width_p), jnp.float32),
            grid=(num_tiles,),
            in_specs=in_specs,
            out_specs=out_spec,
            compiler_params=pltpu.CompilerParams(
                dimension_semantics=("parallel",),   # shard batch grid (v7x megacore)
                vmem_limit_bytes=vmem_budget,        # generation-aware budget
            ),
        )(x_in, w1, b1, w2, b2)

    try:
        packed = run(True)
    except Exception:
        # Conservative fallback if this JAX build rejects pipeline_mode/Buffered.
        packed = run(False)

    packed = packed[:B]
    mean = packed[:, :no]
    std = packed[:, no:2 * no]
    value = packed[:, 2 * no:2 * no + 1]
    return mean, std, value


def init_params(key, num_inputs, num_outputs, hidden_size):
    """Deterministic PyTorch-style uniform(-1/sqrt(fan_in), 1/sqrt(fan_in)) init.

    Weights are stored (in, out) — i.e. already transposed relative to
    torch.nn.Linear's (out, in) — so the kernel computes x @ W + b.
    """
    def linear(k, fan_in, fan_out):
        kw, kb = jax.random.split(k)
        bound = 1.0 / jnp.sqrt(float(fan_in))
        w = jax.random.uniform(kw, (fan_in, fan_out), jnp.float32, -bound, bound)
        b = jax.random.uniform(kb, (1, fan_out), jnp.float32, -bound, bound)
        return w, b

    k1, k2, k3, k4, k5 = jax.random.split(key, 5)
    w1c, b1c = linear(k1, num_inputs, hidden_size)    # critic[0]
    w2c, b2c = linear(k2, hidden_size, 1)             # critic[2]
    wa, ba = linear(k3, num_inputs, hidden_size)      # actor_hidden1
    wmu, bmu = linear(k4, hidden_size, num_outputs)   # mu
    wvar, bvar = linear(k5, hidden_size, num_outputs)  # var
    return dict(
        w1c=w1c, b1c=b1c, w2c=w2c, b2c=b2c,
        wa=wa, ba=ba, wmu=wmu, bmu=bmu, wvar=wvar, bvar=bvar,
    )


def reference_forward(x, p, dot_dtype=jnp.float32):
    """Pure-JAX reference matching the PyTorch module semantics.

    dot_dtype controls the matmul input precision (f32 = exact PyTorch
    semantics; bf16 = same casts as the optimized kernel, f32 accumulation).
    """
    def dot(a, w):
        return jnp.dot(a.astype(dot_dtype), w.astype(dot_dtype),
                       preferred_element_type=jnp.float32)

    h_c = jnp.maximum(dot(x, p["w1c"]) + p["b1c"], 0.0)
    value = dot(h_c, p["w2c"]) + p["b2c"]
    h_a = jnp.maximum(dot(x, p["wa"]) + p["ba"], 0.0)
    mean = jnp.clip(dot(h_a, p["wmu"]) + p["bmu"], -1.0, 1.0)
    var = jax.nn.softplus(dot(h_a, p["wvar"]) + p["bvar"]) + 1e-5
    return mean, jnp.sqrt(var), value


if __name__ == "__main__":
    # Small shapes consistent with the module's forward.
    batch, num_inputs, num_outputs, hidden_size = 8, 16, 4, 32

    key = jax.random.PRNGKey(0)
    kx, kp = jax.random.split(key)
    x = jax.random.normal(kx, (batch, num_inputs), jnp.float32)
    params = init_params(kp, num_inputs, num_outputs, hidden_size)

    mean, std, value = jax.block_until_ready(actor_critic_forward(x, params))

    # 1) matched-precision reference (same bf16 dot inputs, f32 accumulation)
    mean_m, std_m, value_m = reference_forward(x, params, dot_dtype=jnp.bfloat16)
    # 2) pure f32 reference == exact PyTorch module semantics
    mean_r, std_r, value_r = reference_forward(x, params, dot_dtype=jnp.float32)

    assert mean.shape == (batch, num_outputs)
    assert std.shape == (batch, num_outputs)
    assert value.shape == (batch, 1)

    # kernel must agree tightly with the matched-precision reference ...
    assert jnp.allclose(mean, mean_m, atol=1e-4, rtol=1e-4)
    assert jnp.allclose(std, std_m, atol=1e-4, rtol=1e-4)
    assert jnp.allclose(value, value_m, atol=1e-4, rtol=1e-4)
    # ... and loosely (bf16 dot inputs) with the exact f32 PyTorch semantics.
    assert jnp.allclose(mean, mean_r, atol=5e-2)
    assert jnp.allclose(std, std_r, atol=5e-2)
    assert jnp.allclose(value, value_r, atol=5e-2)

    print("KERNEL_OK")
</pallas_src>

<mosaic_0001>
module attributes {stable_mosaic.version = 11 : i64} {
  func.func @actor_critic_kernel(%arg0: i32, %arg1: memref<16x16xf32, #tpu.memory_space<vmem>>, %arg2: memref<16x64xbf16, #tpu.memory_space<vmem>>, %arg3: memref<1x64xf32, #tpu.memory_space<vmem>>, %arg4: memref<64x128xbf16, #tpu.memory_space<vmem>>, %arg5: memref<1x128xf32, #tpu.memory_space<vmem>>, %arg6: memref<16x128xf32, #tpu.memory_space<vmem>>) attributes {dimension_semantics = [#tpu.dimension_semantics<parallel>], iteration_bounds = array<i64: 1>, scalar_prefetch = 0 : i64, scratch_operands = 0 : i64, tpu.core_type = #tpu.core_type<tc>, window_params = [{transform_indices = @transform_0, window_bounds = array<i64: 16, 16>}, {pipeline_mode = #tpu.pipeline_mode<synchronous>, transform_indices = @transform_1, window_bounds = array<i64: 16, 64>}, {pipeline_mode = #tpu.pipeline_mode<synchronous>, transform_indices = @transform_2, window_bounds = array<i64: 1, 64>}, {pipeline_mode = #tpu.pipeline_mode<synchronous>, transform_indices = @transform_3, window_bounds = array<i64: 64, 128>}, {pipeline_mode = #tpu.pipeline_mode<synchronous>, transform_indices = @transform_4, window_bounds = array<i64: 1, 128>}, {transform_indices = @transform_5, window_bounds = array<i64: 16, 128>}]} {
    %c0 = arith.constant 0 : index
    %c0_0 = arith.constant 0 : index
    %0 = vector.load %arg1[%c0, %c0_0] : memref<16x16xf32, #tpu.memory_space<vmem>>, vector<16x16xf32>
    %1 = arith.truncf %0 : vector<16x16xf32> to vector<16x16xbf16>
    %c0_1 = arith.constant 0 : index
    %c0_2 = arith.constant 0 : index
    %2 = vector.load %arg2[%c0_1, %c0_2] : memref<16x64xbf16, #tpu.memory_space<vmem>>, vector<16x64xbf16>
    %cst = arith.constant dense<0.000000e+00> : vector<16x64xf32>
    %3 = tpu.matmul %1, %2, %cst {dimension_numbers = #tpu.dot_dimension_numbers<[1], [0], [0], [1], [0, 0, 1, 1], [], []>} : vector<16x16xbf16>, vector<16x64xbf16>, vector<16x64xf32> -> vector<16x64xf32>
    %c0_3 = arith.constant 0 : index
    %c0_4 = arith.constant 0 : index
    %4 = vector.load %arg3[%c0_3, %c0_4] : memref<1x64xf32, #tpu.memory_space<vmem>>, vector<1x64xf32>
    %5 = vector.broadcast %4 : vector<1x64xf32> to vector<16x64xf32>
    %6 = arith.addf %3, %5 : vector<16x64xf32>
    %cst_5 = arith.constant 0.000000e+00 : f32
    %7 = vector.broadcast %cst_5 : f32 to vector<16x64xf32>
    %8 = arith.maximumf %6, %7 : vector<16x64xf32>
    %9 = arith.truncf %8 : vector<16x64xf32> to vector<16x64xbf16>
    %c0_6 = arith.constant 0 : index
    %c0_7 = arith.constant 0 : index
    %10 = vector.load %arg4[%c0_6, %c0_7] : memref<64x128xbf16, #tpu.memory_space<vmem>>, vector<64x128xbf16>
    %cst_8 = arith.constant dense<0.000000e+00> : vector<16x128xf32>
    %11 = tpu.matmul %9, %10, %cst_8 {dimension_numbers = #tpu.dot_dimension_numbers<[1], [0], [0], [1], [0, 0, 1, 1], [], []>} : vector<16x64xbf16>, vector<64x128xbf16>, vector<16x128xf32> -> vector<16x128xf32>
    %c0_9 = arith.constant 0 : index
    %c0_10 = arith.constant 0 : index
    %12 = vector.load %arg5[%c0_9, %c0_10] : memref<1x128xf32, #tpu.memory_space<vmem>>, vector<1x128xf32>
    %13 = vector.broadcast %12 : vector<1x128xf32> to vector<16x128xf32>
    %14 = arith.addf %11, %13 : vector<16x128xf32>
    %cst_11 = arith.constant -1.000000e+00 : f32
    %cst_12 = arith.constant 1.000000e+00 : f32
    %15 = vector.broadcast %cst_11 : f32 to vector<16x128xf32>
    %16 = arith.maximumf %15, %14 : vector<16x128xf32>
    %17 = vector.broadcast %cst_12 : f32 to vector<16x128xf32>
    %18 = arith.minimumf %17, %16 : vector<16x128xf32>
    %cst_13 = arith.constant 0.000000e+00 : f32
    %19 = vector.broadcast %cst_13 : f32 to vector<16x128xf32>
    %20 = arith.maximumf %14, %19 : vector<16x128xf32>
    %21 = math.absf %14 : vector<16x128xf32>
    %cst_14 = arith.constant 0.000000e+00 : f32
    %22 = vector.broadcast %cst_14 : f32 to vector<16x128xf32>
    %23 = arith.subf %22, %21 : vector<16x128xf32>
    %24 = math.exp %23 : vector<16x128xf32>
    %25 = math.log1p %24 : vector<16x128xf32>
    %26 = arith.addf %20, %25 : vector<16x128xf32>
    %cst_15 = arith.constant 9.99999974E-6 : f32
    %27 = vector.broadcast %cst_15 : f32 to vector<16x128xf32>
    %28 = arith.addf %26, %27 : vector<16x128xf32>
    %29 = math.sqrt %28 : vector<16x128xf32>
    %30 = tpu.iota {dimensions = array<i32: 1>} : vector<16x128xi32>
    %c4_i32 = arith.constant 4 : i32
    %31 = vector.broadcast %c4_i32 : i32 to vector<16x128xi32>
    %32 = arith.cmpi slt, %30, %31 : vector<16x128xi32>
    %c8_i32 = arith.constant 8 : i32
    %33 = vector.broadcast %c8_i32 : i32 to vector<16x128xi32>
    %34 = arith.cmpi slt, %30, %33 : vector<16x128xi32>
    %35 = arith.select %34, %29, %14 : vector<16x128xi1>, vector<16x128xf32>
    %36 = arith.select %32, %18, %35 : vector<16x128xi1>, vector<16x128xf32>
    %c0_16 = arith.constant 0 : index
    %c0_17 = arith.constant 0 : index
    %37 = vector.load %arg6[%c0_16, %c0_17] : memref<16x128xf32, #tpu.memory_space<vmem>>, vector<16x128xf32>
    tpu.vector_store %arg6[%c0_16, %c0_17], %36 {strides = array<i32>} : memref<16x128xf32, #tpu.memory_space<vmem>>, vector<16x128xf32>,
    return
  }
  func.func @transform_0(%arg0: i32) -> (i32, i32) {
    %c0_i32 = arith.constant 0 : i32
    %c0_i32_0 = arith.constant 0 : i32
    return %arg0, %c0_i32 : i32, i32
  }
  func.func @transform_1(%arg0: i32) -> (i32, i32) {
    %c0_i32 = arith.constant 0 : i32
    %c0_i32_0 = arith.constant 0 : i32
    %c0_i32_1 = arith.constant 0 : i32
    return %c0_i32, %c0_i32_0 : i32, i32
  }
  func.func @transform_2(%arg0: i32) -> (i32, i32) {
    %c0_i32 = arith.constant 0 : i32
    %c0_i32_0 = arith.constant 0 : i32
    %c0_i32_1 = arith.constant 0 : i32
    return %c0_i32, %c0_i32_0 : i32, i32
  }
  func.func @transform_3(%arg0: i32) -> (i32, i32) {
    %c0_i32 = arith.constant 0 : i32
    %c0_i32_0 = arith.constant 0 : i32
    %c0_i32_1 = arith.constant 0 : i32
    return %c0_i32, %c0_i32_0 : i32, i32
  }
  func.func @transform_4(%arg0: i32) -> (i32, i32) {
    %c0_i32 = arith.constant 0 : i32
    %c0_i32_0 = arith.constant 0 : i32
    %c0_i32_1 = arith.constant 0 : i32
    return %c0_i32, %c0_i32_0 : i32, i32
  }
  func.func @transform_5(%arg0: i32) -> (i32, i32) {
    %c0_i32 = arith.constant 0 : i32
    %c0_i32_0 = arith.constant 0 : i32
    return %arg0, %c0_i32 : i32, i32
  }
}

</mosaic_0001>

<llo_original>
// kernel: tpu_custom_call.1
$region0: #{tpu_custom_call.1}
  #allocation0 [shape = 'u32[]', space=smem, size = 0x4, offset = 0x4, fixed_abs, tag = 'smem constant byte address 0x4 - core index']
  #allocation1 [shape = 'u32[144,128]{1,0:T(1,128)}', space=vmem, size = 0x12000, scoped, tag = 'internal scratch']
  %s0 = inlined_call_operand.hbm [shape: f32[16,16], index: 0, kind: input, shape index: {}]
  %s1 = inlined_call_operand.hbm [shape: bf16[16,64], index: 1, kind: input, shape index: {}]
  %s2 = inlined_call_operand.vmem [shape: f32[1,64], index: 2, kind: input, shape index: {}]
  %s3 = inlined_call_operand.hbm [shape: bf16[64,128], index: 3, kind: input, shape index: {}]
  %s4 = inlined_call_operand.vmem [shape: f32[1,128], index: 4, kind: input, shape index: {}]
  %s5 = inlined_call_operand.hbm [shape: f32[16,128], index: 5, kind: output, shape index: {}]
  %s6 = sld [smem:[#allocation0]]
  $region42: #{tpu_custom_call.1} parent=0
    _
  %s8 = ssub.s32 1, %s6
  %s9 = scalar_select 0, %s8, %s6
  $region1: #{tpu_custom_call.1} parent=0
    #allocation2 [shape = 'u8[8192]{0}', space=vmem, size = 0x2000, scoped, tag = 'input window, operand 0, single buffered']
    #allocation3 [shape = 's32[1]{0}', space=sflag, size = 0x4, scoped, tag = 'scoped memory for tpu_custom_call.1']
    #allocation4 [shape = 's32[1]{0}', space=sflag, size = 0x4, scoped, tag = 'scoped memory for tpu_custom_call.1']
    #allocation5 [shape = 'u8[4096]{0}', space=vmem, size = 0x1000, scoped, tag = 'input window, operand 1, single buffered']
    #allocation6 [shape = 's32[1]{0}', space=sflag, size = 0x4, scoped, tag = 'scoped memory for tpu_custom_call.1']
    #allocation7 [shape = 'u8[16384]{0}', space=vmem, size = 0x4000, scoped, tag = 'input window, operand 3, single buffered']
    #allocation8 [shape = 'u8[8192]{0}', space=vmem, size = 0x2000, scoped, tag = 'output window, operand 0, single buffered']
    %10 = vsyncpa [#allocation3], 0
    %11 = vsyncpa [#allocation6], 0
    %12 = vsyncpa [#allocation4], 0
    // Predicated region
    $region2: #{tpu_custom_call.1} parent=1 // pred_check
      _
    $region3: #{tpu_custom_call.1} parent=1 // pred_check_branch
      %14 = sbr.rel (0) target = $region5
    $region4: #{tpu_custom_call.1} parent=1 // pred_region
      %s16 = ssub.s32 256, 256
      %17 = vsyncadd [#allocation3], %s16
      %s18 = sshll.u32 [#allocation2], 4
      %s19 = int_to_ptr.vmem [resolvable:$true] %s18
      %24 = dma.hbm_to_vmem [thread:$0]  %s0, 256, %s19, [#allocation3], 128, 128, 8
    $region5: #{tpu_custom_call.1} parent=1 // pred_fallthru
      _
    // Predicated region
    $region6: #{tpu_custom_call.1} parent=1 // pred_check
      _
    $region7: #{tpu_custom_call.1} parent=1 // pred_check_branch
      %26 = sbr.rel (0) target = $region9
    $region8: #{tpu_custom_call.1} parent=1 // pred_region
      %s28 = ssub.s32 128, 128
      %29 = vsyncadd [#allocation6], %s28
      %s30 = sshll.u32 [#allocation5], 4
      %s31 = int_to_ptr.vmem [resolvable:$true] %s30
      %36 = dma.hbm_to_vmem [thread:$0]  %s1, 128, %s31, [#allocation6], 64, 64, 4
    $region9: #{tpu_custom_call.1} parent=1 // pred_fallthru
      _
    // Predicated region
    $region10: #{tpu_custom_call.1} parent=1 // pred_check
      _
    $region11: #{tpu_custom_call.1} parent=1 // pred_check_branch
      %38 = sbr.rel (0) target = $region13
    $region12: #{tpu_custom_call.1} parent=1 // pred_region
      _
    $region13: #{tpu_custom_call.1} parent=1 // pred_fallthru
      _
    // Predicated region
    $region14: #{tpu_custom_call.1} parent=1 // pred_check
      _
    $region15: #{tpu_custom_call.1} parent=1 // pred_check_branch
      %40 = sbr.rel (0) target = $region17
    $region16: #{tpu_custom_call.1} parent=1 // pred_region
      %s42 = ssub.s32 512, 512
      %43 = vsyncadd [#allocation6], %s42
      %s44 = sshll.u32 [#allocation7], 4
      %s45 = int_to_ptr.vmem [resolvable:$true] %s44
      %50 = dma.hbm_to_vmem [thread:$0]  %s3, 512, %s45, [#allocation6], 64, 64, 4
    $region17: #{tpu_custom_call.1} parent=1 // pred_fallthru
      _
    // Predicated region
    $region18: #{tpu_custom_call.1} parent=1 // pred_check
      _
    $region19: #{tpu_custom_call.1} parent=1 // pred_check_branch
      %52 = sbr.rel (0) target = $region21
    $region20: #{tpu_custom_call.1} parent=1 // pred_region
      _
    $region21: #{tpu_custom_call.1} parent=1 // pred_fallthru
      _
    // Predicated region
    $region22: #{tpu_custom_call.1} parent=1 // pred_check
      _
    $region23: #{tpu_custom_call.1} parent=1 // pred_check_branch
      %54 = sbr.rel (0) target = $region25
    $region24: #{tpu_custom_call.1} parent=1 // pred_region
      %55 = dma.done [#allocation3], 256
    $region25: #{tpu_custom_call.1} parent=1 // pred_fallthru
      _
    // Predicated region
    $region26: #{tpu_custom_call.1} parent=1 // pred_check
      _
    $region27: #{tpu_custom_call.1} parent=1 // pred_check_branch
      %57 = sbr.rel (0) target = $region29
    $region28: #{tpu_custom_call.1} parent=1 // pred_region
      %58 = dma.done [#allocation6], 128
    $region29: #{tpu_custom_call.1} parent=1 // pred_fallthru
      _
    // Predicated region
    $region30: #{tpu_custom_call.1} parent=1 // pred_check
      _
    $region31: #{tpu_custom_call.1} parent=1 // pred_check_branch
      %60 = sbr.rel (0) target = $region33
    $region32: #{tpu_custom_call.1} parent=1 // pred_region
      %61 = dma.done [#allocation6], 512
    $region33: #{tpu_custom_call.1} parent=1 // pred_fallthru
      _
    %v63 = vld [vmem:[#allocation2] sm:$0xff]
    %v64 = vld [vmem:[#allocation2 + $0x8] sm:$0xff]
    %v65 = vpack.c.bf16 %v64, %v63
    %v66 = vld [vmem:[#allocation5] sm:$0xf]
    %v67 = vld [vmem:[#allocation5 + $0x4] sm:$0xf]
    %v68 = vld [vmem:[%s2] sm:$0x1]
    %v70 = vlaneseq
    %v71 = vshrl.u32 %v70, 7
    %v72 = vsub.s32 0, %v71
    %v73 = vrot.slane %v68, %v72
    %v77 = vunpack.c.l.b16 %v66
    %v78 = vunpack.c.l.b16 %v67
    %v79 = vpack.c.b16 %v78, %v77
    %vm81 = vcmask 130048
    %v83 = vsel %vm81, %v65, 0
    %85 = vmatprep.subr.bf16.mxu0 0
    %86 = vmatpush1.bf16.msra.mxu0 0
    %87 = vmatprep.subr.bf16.mxu0 0
    %88 = vmatpush1.bf16.msra.mxu0 0
    %89 = vmatprep.subr.bf16.mxu0 0
    %90 = vmatpush1.bf16.msra.mxu0 0
    %91 = vmatprep.subr.bf16.mxu0 0
    %92 = vmatpush1.bf16.msra.mxu0 0
    %93 = vmatprep.subr.bf16.mxu0 0
    %94 = vmatpush1.bf16.msra.mxu0 0
    %95 = vmatprep.subr.bf16.mxu0 0
    %96 = vmatpush1.bf16.msra.mxu0 0
    %97 = vmatprep.subr.bf16.mxu0 0
    %98 = vmatpush1.bf16.msra.mxu0 0
    %99 = vmatprep.subr.bf16.mxu0 0
    %100 = vmatpush1.bf16.msra.mxu0 %v79
    %101 = vmatprep.subr.bf16.mxu0 0
    %102 = vmatpush2.bf16.msra.mxu0 0
    %103 = vmatprep.subr.bf16.mxu0 0
    %104 = vmatpush2.bf16.msra.mxu0 0
    %105 = vmatprep.subr.bf16.mxu0 0
    %106 = vmatpush2.bf16.msra.mxu0 0
    %107 = vmatprep.subr.bf16.mxu0 0
    %108 = vmatpush2.bf16.msra.mxu0 0
    %109 = vmatprep.subr.bf16.mxu0 0
    %110 = vmatpush2.bf16.msra.mxu0 0
    %111 = vmatprep.subr.bf16.mxu0 0
    %112 = vmatpush2.bf16.msra.mxu0 0
    %113 = vmatprep.subr.bf16.mxu0 0
    %114 = vmatpush2.bf16.msra.mxu0 0
    %115 = vmatprep.subr.bf16.mxu0 0
    %116 = vmatpush2.bf16.msra.mxu0 0
    %117 = vmatprep.mubr.bf16.mxu0 0
    %118 = vmatmul.mubr.bf16.gmra.mxu0 %v83
    %v119 = vpop.f32.mrf.mxu0
    %v120 = vadd.f32 %v73, %v119
    %v121 = vpop.f32.mrf.mxu0
    %v122 = vpop.f32.mrf.mxu0
    %v123 = vadd.f32 %v73, %v122
    %v124 = vpop.f32.mrf.mxu0
    %125 = vdwg.mxu0
    %v126 = vmax.f32 %v120, 0.0
    %v127 = vmax.f32 %v123, 0.0
    %v128 = vpack.c.bf16 %v127, %v126
    %v129 = vld [vmem:[#allocation7] sm:$0xf]
    %v130 = vld [vmem:[#allocation7 + $0x4] sm:$0xf]
    %v131 = vld [vmem:[#allocation7 + $0x8] sm:$0xf]
    %v132 = vld [vmem:[#allocation7 + $0xc] sm:$0xf]
    %v133 = vld [vmem:[#allocation7 + $0x10] sm:$0xf]
    %v134 = vld [vmem:[#allocation7 + $0x14] sm:$0xf]
    %v135 = vld [vmem:[#allocation7 + $0x18] sm:$0xf]
    %v136 = vld [vmem:[#allocation7 + $0x1c] sm:$0xf]
    %v137 = vld [vmem:[%s4] sm:$0x1]
    %v139 = vlaneseq
    %v140 = vshrl.u32 %v139, 7
    %v141 = vsub.s32 0, %v140
    %v142 = vrot.slane %v137, %v141
    %v152 = vunpack.c.l.b16 %v129
    %v153 = vunpack.c.l.b16 %v130
    %v154 = vunpack.c.l.b16 %v131
    %v155 = vunpack.c.l.b16 %v132
    %v156 = vunpack.c.l.b16 %v133
    %v157 = vunpack.c.l.b16 %v134
    %v158 = vunpack.c.l.b16 %v135
    %v159 = vunpack.c.l.b16 %v136
    %v160 = vpack.c.b16 %v153, %v152
    %v161 = vpack.c.b16 %v155, %v154
    %v162 = vpack.c.b16 %v157, %v156
    %v163 = vpack.c.b16 %v159, %v158
    %vm168 = vcmask 523264
    %v170 = vsel %vm168, %v128, 0
    %172 = vmatprep.subr.bf16.mxu0 0
    %173 = vmatpush1.bf16.msra.mxu0 0
    %174 = vmatprep.subr.bf16.mxu0 0
    %175 = vmatpush1.bf16.msra.mxu0 0
    %176 = vmatprep.subr.bf16.mxu0 0
    %177 = vmatpush1.bf16.msra.mxu0 0
    %178 = vmatprep.subr.bf16.mxu0 0
    %179 = vmatpush1.bf16.msra.mxu0 0
    %180 = vmatprep.subr.bf16.mxu0 0
    %181 = vmatpush1.bf16.msra.mxu0 %v163
    %182 = vmatprep.subr.bf16.mxu0 0
    %183 = vmatpush1.bf16.msra.mxu0 %v162
    %184 = vmatprep.subr.bf16.mxu0 0
    %185 = vmatpush1.bf16.msra.mxu0 %v161
    %186 = vmatprep.subr.bf16.mxu0 0
    %187 = vmatpush1.bf16.msra.mxu0 %v160
    %188 = vmatprep.subr.bf16.mxu0 0
    %189 = vmatpush2.bf16.msra.mxu0 0
    %190 = vmatprep.subr.bf16.mxu0 0
    %191 = vmatpush2.bf16.msra.mxu0 0
    %192 = vmatprep.subr.bf16.mxu0 0
    %193 = vmatpush2.bf16.msra.mxu0 0
    %194 = vmatprep.subr.bf16.mxu0 0
    %195 = vmatpush2.bf16.msra.mxu0 0
    %196 = vmatprep.subr.bf16.mxu0 0
    %197 = vmatpush2.bf16.msra.mxu0 0
    %198 = vmatprep.subr.bf16.mxu0 0
    %199 = vmatpush2.bf16.msra.mxu0 0
    %200 = vmatprep.subr.bf16.mxu0 0
    %201 = vmatpush2.bf16.msra.mxu0 0
    %202 = vmatprep.subr.bf16.mxu0 0
    %203 = vmatpush2.bf16.msra.mxu0 0
    %204 = vmatprep.mubr.bf16.mxu0 0
    %205 = vmatmul.mubr.bf16.gmra.mxu0 %v170
    %v206 = vpop.f32.mrf.mxu0
    %v207 = vadd.f32 %v142, %v206
    %v208 = vpop.f32.mrf.mxu0
    %v209 = vpop.f32.mrf.mxu0
    %v210 = vadd.f32 %v142, %v209
    %v211 = vpop.f32.mrf.mxu0
    %212 = vdwg.mxu0
    %v213 = vmax.f32 %v207, -1.0
    %v214 = vmax.f32 %v210, -1.0
    %v215 = vmin.f32 %v213, 1.0
    %v216 = vmin.f32 %v214, 1.0
    %v217 = vmax.f32 %v207, 0.0
    %v218 = vmax.f32 %v210, 0.0
    %v219 = vand.u32 2147483647, %v207
    %v220 = vand.u32 2147483647, %v210
    %v221 = vsub.f32 0.0, %v219
    %v222 = vsub.f32 0.0, %v220
    %v223 = vmul.f32 %v221, 1.442695
    %v224 = vpow.pop %v223
    %v225 = vmul.f32 %v222, 1.442695
    %v226 = vpow.pop %v225
    %v227 = vadd.f32 %v224, 1.0
    %v228 = vlog2.pop %v227
    %v229 = vmul.f32 %v228, 0.6931472
    %v230 = vmul.f32 -0.5, %v224
    %v231 = vadd.f32 %v230, 1.0
    %v232 = vmul.f32 %v231, %v224
    %v233 = vand.u32 2147483647, %v224
    %vm234 = vcmp.lt.f32.partialorder %v233, 0.0004427343
    %v235 = vsel %vm234, %v232, %v229
    %v236 = vadd.f32 %v226, 1.0
    %v237 = vlog2.pop %v236
    %v238 = vmul.f32 %v237, 0.6931472
    %v239 = vmul.f32 -0.5, %v226
    %v240 = vadd.f32 %v239, 1.0
    %v241 = vmul.f32 %v240, %v226
    %v242 = vand.u32 2147483647, %v226
    %vm243 = vcmp.lt.f32.partialorder %v242, 0.0004427343
    %v244 = vsel %vm243, %v241, %v238
    %v245 = vadd.f32 %v217, %v235
    %v246 = vadd.f32 %v218, %v244
    %v247 = vadd.f32 %v245, 1e-05
    %v248 = vadd.f32 %v246, 1e-05
    %v249 = vrsqrt.pop %v247
    %v250 = vmul.f32 %v247, %v249
    %vm251 = vcmp.eq.f32.partialorder %v247, inf
    %v252 = vsel %vm251, %v247, %v250
    %vm253 = vcmp.eq.f32.partialorder %v247, 0.0
    %v254 = vand.u32 %v247, 2147483648
    %v255 = vsel %vm253, %v254, %v252
    %v256 = vrsqrt.pop %v248
    %v257 = vmul.f32 %v248, %v256
    %vm258 = vcmp.eq.f32.partialorder %v248, inf
    %v259 = vsel %vm258, %v248, %v257
    %vm260 = vcmp.eq.f32.partialorder %v248, 0.0
    %v261 = vand.u32 %v248, 2147483648
    %v262 = vsel %vm260, %v261, %v259
    %v263 = vlaneseq
    %v264 = vand.u32 %v263, 127
    %vm265 = vcmp.lt.s32.totalorder %v264, 4
    %vm266 = vcmp.lt.s32.totalorder %v264, 8
    %v267 = vsel %vm266, %v255, %v207
    %v268 = vsel %vm266, %v262, %v210
    %v269 = vsel %vm265, %v215, %v267
    %v270 = vsel %vm265, %v216, %v268
    %271 = vst [vmem:[#allocation8] sm:$0xff] %v269
    %272 = vst [vmem:[#allocation8 + $0x8] sm:$0xff] %v270
    // Predicated region
    $region34: #{tpu_custom_call.1} parent=1 // pred_check
      _
    $region35: #{tpu_custom_call.1} parent=1 // pred_check_branch
      %274 = sbr.rel (0) target = $region37
    $region36: #{tpu_custom_call.1} parent=1 // pred_region
      %s276 = ssub.s32 256, 256
      %277 = vsyncadd [#allocation4], %s276
      %s278 = sshll.u32 [#allocation8], 4
      %s279 = int_to_ptr.vmem [resolvable:$true] %s278
      %284 = dma.vmem_to_hbm [thread:$0]  %s279, 256, %s5, [#allocation4], 128, 128, 8
    $region37: #{tpu_custom_call.1} parent=1 // pred_fallthru
      _
    // Predicated region
    $region38: #{tpu_custom_call.1} parent=1 // pred_check
      _
    $region39: #{tpu_custom_call.1} parent=1 // pred_check_branch
      %286 = sbr.rel (0) target = $region41
    $region40: #{tpu_custom_call.1} parent=1 // pred_region
      %287 = dma.done [#allocation4], 256
    $region41: #{tpu_custom_call.1} parent=1 // pred_fallthru
      _
    %288 = vsyncpa [#allocation3], 1
    %289 = vsyncpa [#allocation6], 1
    %290 = vsyncpa [#allocation4], 1

</llo_original>
